<compile_context>
chip_gen: v6e
topology: v6e:2x2x1
jax: 0.10.0
libtpu: 0.0.40
codegen_flags: <defaults>
</compile_context>

<pallas_src>
import functools

import jax
import jax.numpy as jnp
from jax.experimental import pallas as pl
from jax.experimental.pallas import tpu as pltpu

_LANES = 128                              # vreg lane width
_VMEM_LIMIT_BYTES = 32 * 1024 * 1024      # safe scoped limit on v5e/v6e/v7x
_TILE_BUDGET_BYTES = 8 * 1024 * 1024      # double-buffered in + out tiles
_MAX_ROW_TILE = 2048                      # rows per grid step (upper cap)


def _cdiv(a, b):
    return -(-a // b)


def _pick_row_tile(n_rows, width_elems, itemsize):
    """Largest multiple-of-8 row tile whose double-buffered in+out fits the budget."""
    per_row = 4 * width_elems * itemsize          # 2 bufs x (in + out) per row
    tr = _TILE_BUDGET_BYTES // max(per_row, 1)
    tr = max(8, min(_MAX_ROW_TILE, tr))
    tr = (tr // 8) * 8
    if n_rows <= tr:
        # Small problem: shrink the tile to the work size, but keep >= 2 grid
        # steps when possible so both v7x TensorCores get rows.
        if n_rows > 8:
            tr = max(8, _cdiv(_cdiv(n_rows, 2), 8) * 8)
        else:
            tr = 8
    return tr


def _pad_rows(x2, target_rows):
    pad = target_rows - x2.shape[0]
    if pad == 0:
        return x2
    return jnp.pad(x2, ((0, pad), (0, 0)))


# ---------------------------------------------------------------------------
# Kernels
# ---------------------------------------------------------------------------
def _ln1_rowwise_kernel(x_ref, a_ref, b_ref, o_ref, *, eps, n):
    """Generic path: one logical row per tile row (features laid out on lanes)."""
    x = x_ref[...].astype(jnp.float32)                       # (TR, F)
    # Single pass over the tile: sum and sum-of-squares together.
    s = jnp.sum(x, axis=-1, keepdims=True)                   # (TR, 1)
    sq = jnp.sum(x * x, axis=-1, keepdims=True)              # (TR, 1)
    mean = s * (1.0 / n)
    ssd = jnp.maximum(sq - s * mean, 0.0)                    # sum((x-mean)^2)
    denom = jnp.sqrt(ssd) + eps
    inv = pl.reciprocal(denom, approx=True)                  # EUP slot
    inv = inv * (2.0 - denom * inv)                          # 1 Newton step -> ~f32 exact
    y = (a_ref[...].astype(jnp.float32) * (x - mean) * inv
         + b_ref[...].astype(jnp.float32))
    o_ref[...] = y.astype(o_ref.dtype)


def _ln1_folded_kernel(x_ref, seg_ref, a_ref, b_ref, o_ref, *, eps, n):
    """Lane-dense path for features < 128: G = 128//features logical rows are
    folded into each 128-lane tile row.  Per-row reductions become a matmul
    with a block-diagonal 0/1 segment matrix (MXU is idle here, so it's free),
    which also broadcasts the segment sums back across the segment's lanes."""
    x = x_ref[...].astype(jnp.float32)                       # (TR, 128)
    seg = seg_ref[...]                                       # (128, 128), 0/1 block-diag
    ssum = jnp.dot(x, seg, preferred_element_type=jnp.float32)      # per-segment sum, bcast
    ssq = jnp.dot(x * x, seg, preferred_element_type=jnp.float32)   # per-segment sum of sq
    mean = ssum * (1.0 / n)
    ssd = jnp.maximum(ssq - ssum * mean, 0.0)
    denom = jnp.sqrt(ssd) + eps
    inv = pl.reciprocal(denom, approx=True)
    inv = inv * (2.0 - denom * inv)
    y = a_ref[...] * (x - mean) * inv + b_ref[...]
    o_ref[...] = y.astype(o_ref.dtype)


# ---------------------------------------------------------------------------
# Wrappers
# ---------------------------------------------------------------------------
def _layernorm1_rowwise(x2, a_2, b_2, eps, rows, features, itemsize):
    tr = _pick_row_tile(rows, features, itemsize)
    padded = _cdiv(rows, tr) * tr
    xp = _pad_rows(x2, padded)
    a2 = a_2.astype(jnp.float32).reshape(1, features)
    b2 = b_2.astype(jnp.float32).reshape(1, features)

    cost = pl.CostEstimate(
        flops=int(10 * padded * features),
        transcendentals=int(2 * padded),
        bytes_accessed=int(2 * padded * features * itemsize + 2 * features * 4),
    )
    out = pl.pallas_call(
        functools.partial(_ln1_rowwise_kernel, eps=float(eps), n=float(features)),
        out_shape=jax.ShapeDtypeStruct((padded, features), x2.dtype),
        grid_spec=pltpu.PrefetchScalarGridSpec(
            num_scalar_prefetch=0,
            grid=(padded // tr,),
            in_specs=[
                pl.BlockSpec((tr, features), lambda i: (i, 0)),
                pl.BlockSpec((1, features), lambda i: (0, 0)),
                pl.BlockSpec((1, features), lambda i: (0, 0)),
            ],
            out_specs=pl.BlockSpec((tr, features), lambda i: (i, 0)),
        ),
        compiler_params=pltpu.CompilerParams(
            dimension_semantics=("parallel",),
            vmem_limit_bytes=_VMEM_LIMIT_BYTES,
        ),
        cost_estimate=cost,
    )(xp, a2, b2)
    if padded != rows:
        out = out[:rows]
    return out


def _layernorm1_folded(x2, a_2, b_2, eps, rows, features, itemsize):
    g = _LANES // features                     # logical rows per lane-dense row
    folded_rows = _cdiv(rows, g)
    tr = _pick_row_tile(folded_rows, _LANES, itemsize)
    padded_folded = _cdiv(folded_rows, tr) * tr
    padded_rows = padded_folded * g

    xp = _pad_rows(x2, padded_rows).reshape(padded_folded, _LANES)

    # Block-diagonal 0/1 segment matrix: column j sums the lanes of j's segment.
    seg_ids = jnp.arange(_LANES, dtype=jnp.int32) // features
    seg = (seg_ids[:, None] == seg_ids[None, :]).astype(jnp.float32)   # (128, 128)
    a2 = jnp.tile(a_2.astype(jnp.float32), g).reshape(1, _LANES)
    b2 = jnp.tile(b_2.astype(jnp.float32), g).reshape(1, _LANES)

    cost = pl.CostEstimate(
        flops=int(4 * padded_folded * _LANES * _LANES + 10 * padded_folded * _LANES),
        transcendentals=int(2 * padded_folded * _LANES),
        bytes_accessed=int(2 * padded_folded * _LANES * itemsize + _LANES * _LANES * 4),
    )
    out = pl.pallas_call(
        functools.partial(_ln1_folded_kernel, eps=float(eps), n=float(features)),
        out_shape=jax.ShapeDtypeStruct((padded_folded, _LANES), x2.dtype),
        grid_spec=pltpu.PrefetchScalarGridSpec(
            num_scalar_prefetch=0,
            grid=(padded_folded // tr,),
            in_specs=[
                pl.BlockSpec((tr, _LANES), lambda i: (i, 0)),
                pl.BlockSpec((_LANES, _LANES), lambda i: (0, 0)),
                pl.BlockSpec((1, _LANES), lambda i: (0, 0)),
                pl.BlockSpec((1, _LANES), lambda i: (0, 0)),
            ],
            out_specs=pl.BlockSpec((tr, _LANES), lambda i: (i, 0)),
        ),
        compiler_params=pltpu.CompilerParams(
            dimension_semantics=("parallel",),
            vmem_limit_bytes=_VMEM_LIMIT_BYTES,
        ),
        cost_estimate=cost,
    )(xp, seg, a2, b2)
    out = out.reshape(padded_rows, features)
    if padded_rows != rows:
        out = out[:rows]
    return out


def layernorm1(x, a_2, b_2, eps=1e-6):
    """Apply LayerNorm1 over the last axis of x.

    x:   (..., features)   a_2: (features,) scale   b_2: (features,) shift
    """
    orig_shape = x.shape
    features = orig_shape[-1]
    rows = 1
    for d in orig_shape[:-1]:
        rows *= d
    x2 = x.reshape(rows, features)
    itemsize = jnp.dtype(x.dtype).itemsize

    if features < _LANES and _LANES % features == 0:
        out2 = _layernorm1_folded(x2, a_2, b_2, eps, rows, features, itemsize)
    else:
        # TODO(synk): features < 128 that do not evenly divide 128 still hit
        # lane-sparse (masked) stores; a ragged segment fold would fix that.
        out2 = _layernorm1_rowwise(x2, a_2, b_2, eps, rows, features, itemsize)
    return out2.reshape(orig_shape)


# ---------------------------------------------------------------------------
# Reference + smoke test
# ---------------------------------------------------------------------------
def _reference(x, a_2, b_2, eps=1e-6):
    x32 = x.astype(jnp.float32)
    mean = jnp.mean(x32, axis=-1, keepdims=True)
    xc = x32 - mean
    std = jnp.sqrt(jnp.sum(xc * xc, axis=-1, keepdims=True))
    y = a_2.astype(jnp.float32) * xc / (std + eps) + b_2.astype(jnp.float32)
    return y.astype(x.dtype)


if __name__ == "__main__":
    root = jax.random.PRNGKey(0)
    kx, ka, kb, kx2, ka2, kb2 = jax.random.split(root, 6)

    # Encoder layout: (batch, seq, hidden), normalization over hidden.
    batch, seq, hidden = 2, 8, 32
    x = jax.random.normal(kx, (batch, seq, hidden), dtype=jnp.float32)
    a_2 = jax.random.normal(ka, (hidden,), dtype=jnp.float32)
    b_2 = jax.random.normal(kb, (hidden,), dtype=jnp.float32)

    out = jax.block_until_ready(layernorm1(x, a_2, b_2))
    ref = _reference(x, a_2, b_2)
    assert out.shape == x.shape and out.dtype == x.dtype
    # Folded path reduces via an MXU matmul; tolerance covers a possible
    # reduced-precision accumulation pass (in practice the error is ~1e-6).
    assert jnp.allclose(out, ref, atol=3e-3, rtol=3e-3), float(jnp.max(jnp.abs(out - ref)))

    # Also exercise the generic lane-aligned path (features multiple of 128).
    hidden2 = 128
    x_b = jax.random.normal(kx2, (batch, seq, hidden2), dtype=jnp.float32)
    a_b = jax.random.normal(ka2, (hidden2,), dtype=jnp.float32)
    b_b = jax.random.normal(kb2, (hidden2,), dtype=jnp.float32)
    out_b = jax.block_until_ready(layernorm1(x_b, a_b, b_b))
    ref_b = _reference(x_b, a_b, b_b)
    assert out_b.shape == x_b.shape and out_b.dtype == x_b.dtype
    assert jnp.allclose(out_b, ref_b, atol=1e-4, rtol=1e-4), float(jnp.max(jnp.abs(out_b - ref_b)))

    print("KERNEL_OK")
</pallas_src>

<mosaic_0001>
module attributes {stable_mosaic.version = 11 : i64} {
  func.func @_ln1_folded_kernel(%arg0: i32, %arg1: memref<8x128xf32, #tpu.memory_space<vmem>>, %arg2: memref<128x128xf32, #tpu.memory_space<vmem>>, %arg3: memref<1x128xf32, #tpu.memory_space<vmem>>, %arg4: memref<1x128xf32, #tpu.memory_space<vmem>>, %arg5: memref<8x128xf32, #tpu.memory_space<vmem>>) attributes {dimension_semantics = [#tpu.dimension_semantics<parallel>], iteration_bounds = array<i64: 1>, scalar_prefetch = 0 : i64, scratch_operands = 0 : i64, tpu.core_type = #tpu.core_type<tc>, window_params = [{transform_indices = @transform_0, window_bounds = array<i64: 8, 128>}, {pipeline_mode = #tpu.pipeline_mode<synchronous>, transform_indices = @transform_1, window_bounds = array<i64: 128, 128>}, {pipeline_mode = #tpu.pipeline_mode<synchronous>, transform_indices = @transform_2, window_bounds = array<i64: 1, 128>}, {pipeline_mode = #tpu.pipeline_mode<synchronous>, transform_indices = @transform_3, window_bounds = array<i64: 1, 128>}, {transform_indices = @transform_4, window_bounds = array<i64: 8, 128>}]} {
    %c0 = arith.constant 0 : index
    %c0_0 = arith.constant 0 : index
    %0 = vector.load %arg1[%c0, %c0_0] : memref<8x128xf32, #tpu.memory_space<vmem>>, vector<8x128xf32>
    %c0_1 = arith.constant 0 : index
    %c0_2 = arith.constant 0 : index
    %1 = vector.load %arg2[%c0_1, %c0_2] : memref<128x128xf32, #tpu.memory_space<vmem>>, vector<128x128xf32>
    %cst = arith.constant dense<0.000000e+00> : vector<8x128xf32>
    %2 = tpu.matmul %0, %1, %cst {dimension_numbers = #tpu.dot_dimension_numbers<[1], [0], [0], [1], [0, 0, 1, 1], [], []>} : vector<8x128xf32>, vector<128x128xf32>, vector<8x128xf32> -> vector<8x128xf32>
    %3 = arith.mulf %0, %0 : vector<8x128xf32>
    %cst_3 = arith.constant dense<0.000000e+00> : vector<8x128xf32>
    %4 = tpu.matmul %3, %1, %cst_3 {dimension_numbers = #tpu.dot_dimension_numbers<[1], [0], [0], [1], [0, 0, 1, 1], [], []>} : vector<8x128xf32>, vector<128x128xf32>, vector<8x128xf32> -> vector<8x128xf32>
    %cst_4 = arith.constant 3.125000e-02 : f32
    %5 = vector.broadcast %cst_4 : f32 to vector<8x128xf32>
    %6 = arith.mulf %2, %5 : vector<8x128xf32>
    %7 = arith.mulf %2, %6 : vector<8x128xf32>
    %8 = arith.subf %4, %7 : vector<8x128xf32>
    %cst_5 = arith.constant 0.000000e+00 : f32
    %9 = vector.broadcast %cst_5 : f32 to vector<8x128xf32>
    %10 = arith.maximumf %8, %9 : vector<8x128xf32>
    %11 = math.sqrt %10 : vector<8x128xf32>
    %cst_6 = arith.constant 9.99999997E-7 : f32
    %12 = vector.broadcast %cst_6 : f32 to vector<8x128xf32>
    %13 = arith.addf %11, %12 : vector<8x128xf32>
    %14 = tpu.reciprocal %13 {approx = true} : vector<8x128xf32> -> vector<8x128xf32>
    %15 = arith.mulf %13, %14 : vector<8x128xf32>
    %cst_7 = arith.constant 2.000000e+00 : f32
    %16 = vector.broadcast %cst_7 : f32 to vector<8x128xf32>
    %17 = arith.subf %16, %15 : vector<8x128xf32>
    %18 = arith.mulf %14, %17 : vector<8x128xf32>
    %c0_8 = arith.constant 0 : index
    %c0_9 = arith.constant 0 : index
    %19 = vector.load %arg3[%c0_8, %c0_9] : memref<1x128xf32, #tpu.memory_space<vmem>>, vector<1x128xf32>
    %20 = arith.subf %0, %6 : vector<8x128xf32>
    %21 = vector.broadcast %19 : vector<1x128xf32> to vector<8x128xf32>
    %22 = arith.mulf %21, %20 : vector<8x128xf32>
    %23 = arith.mulf %22, %18 : vector<8x128xf32>
    %c0_10 = arith.constant 0 : index
    %c0_11 = arith.constant 0 : index
    %24 = vector.load %arg4[%c0_10, %c0_11] : memref<1x128xf32, #tpu.memory_space<vmem>>, vector<1x128xf32>
    %25 = vector.broadcast %24 : vector<1x128xf32> to vector<8x128xf32>
    %26 = arith.addf %23, %25 : vector<8x128xf32>
    %c0_12 = arith.constant 0 : index
    %c0_13 = arith.constant 0 : index
    %27 = vector.load %arg5[%c0_12, %c0_13] : memref<8x128xf32, #tpu.memory_space<vmem>>, vector<8x128xf32>
    tpu.vector_store %arg5[%c0_12, %c0_13], %26 {strides = array<i32>} : memref<8x128xf32, #tpu.memory_space<vmem>>, vector<8x128xf32>,
    return
  }
  func.func @transform_0(%arg0: i32) -> (i32, i32) {
    %c0_i32 = arith.constant 0 : i32
    %c0_i32_0 = arith.constant 0 : i32
    return %arg0, %c0_i32 : i32, i32
  }
  func.func @transform_1(%arg0: i32) -> (i32, i32) {
    %c0_i32 = arith.constant 0 : i32
    %c0_i32_0 = arith.constant 0 : i32
    %c0_i32_1 = arith.constant 0 : i32
    return %c0_i32, %c0_i32_0 : i32, i32
  }
  func.func @transform_2(%arg0: i32) -> (i32, i32) {
    %c0_i32 = arith.constant 0 : i32
    %c0_i32_0 = arith.constant 0 : i32
    %c0_i32_1 = arith.constant 0 : i32
    return %c0_i32, %c0_i32_0 : i32, i32
  }
  func.func @transform_3(%arg0: i32) -> (i32, i32) {
    %c0_i32 = arith.constant 0 : i32
    %c0_i32_0 = arith.constant 0 : i32
    %c0_i32_1 = arith.constant 0 : i32
    return %c0_i32, %c0_i32_0 : i32, i32
  }
  func.func @transform_4(%arg0: i32) -> (i32, i32) {
    %c0_i32 = arith.constant 0 : i32
    %c0_i32_0 = arith.constant 0 : i32
    return %arg0, %c0_i32 : i32, i32
  }
}

</mosaic_0001>

<llo_original>
// kernel: tpu_custom_call.1
$region0: #{tpu_custom_call.1}
  #allocation0 [shape = 'u32[]', space=smem, size = 0x4, offset = 0x4, fixed_abs, tag = 'smem constant byte address 0x4 - core index']
  #allocation1 [shape = 'u32[144,128]{1,0:T(1,128)}', space=vmem, size = 0x12000, scoped, tag = 'internal scratch']
  %s0 = inlined_call_operand.hbm [shape: f32[8,128], index: 0, kind: input, shape index: {}]
  %s1 = inlined_call_operand.hbm [shape: f32[128,128], index: 1, kind: input, shape index: {}]
  %s2 = inlined_call_operand.vmem [shape: f32[1,128], index: 2, kind: input, shape index: {}]
  %s3 = inlined_call_operand.vmem [shape: f32[1,128], index: 3, kind: input, shape index: {}]
  %s4 = inlined_call_operand.hbm [shape: f32[8,128], index: 4, kind: output, shape index: {}]
  %s5 = sld [smem:[#allocation0]]
  $region34: #{tpu_custom_call.1} parent=0
    _
  %s7 = ssub.s32 1, %s5
  %s8 = scalar_select 0, %s7, %s5
  $region1: #{tpu_custom_call.1} parent=0
    #allocation2 [shape = 'u8[4096]{0}', space=vmem, size = 0x1000, scoped, tag = 'input window, operand 0, single buffered']
    #allocation3 [shape = 's32[1]{0}', space=sflag, size = 0x4, scoped, tag = 'scoped memory for tpu_custom_call.1']
    #allocation4 [shape = 's32[1]{0}', space=sflag, size = 0x4, scoped, tag = 'scoped memory for tpu_custom_call.1']
    #allocation5 [shape = 'u8[65536]{0}', space=vmem, size = 0x10000, scoped, tag = 'input window, operand 1, single buffered']
    #allocation6 [shape = 's32[1]{0}', space=sflag, size = 0x4, scoped, tag = 'scoped memory for tpu_custom_call.1']
    #allocation7 [shape = 'u8[4096]{0}', space=vmem, size = 0x1000, scoped, tag = 'output window, operand 0, single buffered']
    %9 = vsyncpa [#allocation3], 0
    %10 = vsyncpa [#allocation6], 0
    %11 = vsyncpa [#allocation4], 0
    // Predicated region
    $region2: #{tpu_custom_call.1} parent=1 // pred_check
      _
    $region3: #{tpu_custom_call.1} parent=1 // pred_check_branch
      %13 = sbr.rel (0) target = $region5
    $region4: #{tpu_custom_call.1} parent=1 // pred_region
      %s15 = ssub.s32 128, 128
      %16 = vsyncadd [#allocation3], %s15
      %s18 = sshll.u32 [#allocation2], 4
      %s19 = int_to_ptr.vmem [resolvable:$true] %s18
      %21 = dma.hbm_to_vmem [thread:$0]  %s0, 128, %s19, [#allocation3]
    $region5: #{tpu_custom_call.1} parent=1 // pred_fallthru
      _
    // Predicated region
    $region6: #{tpu_custom_call.1} parent=1 // pred_check
      _
    $region7: #{tpu_custom_call.1} parent=1 // pred_check_branch
      %23 = sbr.rel (0) target = $region9
    $region8: #{tpu_custom_call.1} parent=1 // pred_region
      %s25 = ssub.s32 2048, 2048
      %26 = vsyncadd [#allocation6], %s25
      %s27 = sshll.u32 [#allocation5], 4
      %s28 = int_to_ptr.vmem [resolvable:$true] %s27
      %33 = dma.hbm_to_vmem [thread:$0]  %s1, 2048, %s28, [#allocation6], 128, 128, 8
    $region9: #{tpu_custom_call.1} parent=1 // pred_fallthru
      _
    // Predicated region
    $region10: #{tpu_custom_call.1} parent=1 // pred_check
      _
    $region11: #{tpu_custom_call.1} parent=1 // pred_check_branch
      %35 = sbr.rel (0) target = $region13
    $region12: #{tpu_custom_call.1} parent=1 // pred_region
      _
    $region13: #{tpu_custom_call.1} parent=1 // pred_fallthru
      _
    // Predicated region
    $region14: #{tpu_custom_call.1} parent=1 // pred_check
      _
    $region15: #{tpu_custom_call.1} parent=1 // pred_check_branch
      %37 = sbr.rel (0) target = $region17
    $region16: #{tpu_custom_call.1} parent=1 // pred_region
      _
    $region17: #{tpu_custom_call.1} parent=1 // pred_fallthru
      _
    // Predicated region
    $region18: #{tpu_custom_call.1} parent=1 // pred_check
      _
    $region19: #{tpu_custom_call.1} parent=1 // pred_check_branch
      %39 = sbr.rel (0) target = $region21
    $region20: #{tpu_custom_call.1} parent=1 // pred_region
      %40 = dma.done [#allocation3], 128
    $region21: #{tpu_custom_call.1} parent=1 // pred_fallthru
      _
    // Predicated region
    $region22: #{tpu_custom_call.1} parent=1 // pred_check
      _
    $region23: #{tpu_custom_call.1} parent=1 // pred_check_branch
      %42 = sbr.rel (0) target = $region25
    $region24: #{tpu_custom_call.1} parent=1 // pred_region
      %43 = dma.done [#allocation6], 2048
    $region25: #{tpu_custom_call.1} parent=1 // pred_fallthru
      _
    %v44 = vld [vmem:[#allocation2] sm:$0xff]
    %v45 = vld [vmem:[#allocation5] sm:$0xff]
    %v46 = vld [vmem:[#allocation5 + $0x8] sm:$0xff]
    %v47 = vld [vmem:[#allocation5 + $0x10] sm:$0xff]
    %v48 = vld [vmem:[#allocation5 + $0x18] sm:$0xff]
    %v49 = vld [vmem:[#allocation5 + $0x20] sm:$0xff]
    %v50 = vld [vmem:[#allocation5 + $0x28] sm:$0xff]
    %v51 = vld [vmem:[#allocation5 + $0x30] sm:$0xff]
    %v52 = vld [vmem:[#allocation5 + $0x38] sm:$0xff]
    %v53 = vld [vmem:[#allocation5 + $0x40] sm:$0xff]
    %v54 = vld [vmem:[#allocation5 + $0x48] sm:$0xff]
    %v55 = vld [vmem:[#allocation5 + $0x50] sm:$0xff]
    %v56 = vld [vmem:[#allocation5 + $0x58] sm:$0xff]
    %v57 = vld [vmem:[#allocation5 + $0x60] sm:$0xff]
    %v58 = vld [vmem:[#allocation5 + $0x68] sm:$0xff]
    %v59 = vld [vmem:[#allocation5 + $0x70] sm:$0xff]
    %v60 = vld [vmem:[#allocation5 + $0x78] sm:$0xff]
    %61 = vmatprep.subr.mxu0 0.0
    %62 = vmatpush1.msra.mxu0 %v60
    %63 = vmatprep.subr.mxu0 0.0
    %64 = vmatpush1.msra.mxu0 %v59
    %65 = vmatprep.subr.mxu0 0.0
    %66 = vmatpush1.msra.mxu0 %v58
    %67 = vmatprep.subr.mxu0 0.0
    %68 = vmatpush1.msra.mxu0 %v57
    %69 = vmatprep.subr.mxu0 0.0
    %70 = vmatpush1.msra.mxu0 %v56
    %71 = vmatprep.subr.mxu0 0.0
    %72 = vmatpush1.msra.mxu0 %v55
    %73 = vmatprep.subr.mxu0 0.0
    %74 = vmatpush1.msra.mxu0 %v54
    %75 = vmatprep.subr.mxu0 0.0
    %76 = vmatpush1.msra.mxu0 %v53
    %77 = vmatprep.subr.mxu0 0.0
    %78 = vmatpush1.msra.mxu0 %v52
    %79 = vmatprep.subr.mxu0 0.0
    %80 = vmatpush1.msra.mxu0 %v51
    %81 = vmatprep.subr.mxu0 0.0
    %82 = vmatpush1.msra.mxu0 %v50
    %83 = vmatprep.subr.mxu0 0.0
    %84 = vmatpush1.msra.mxu0 %v49
    %85 = vmatprep.subr.mxu0 0.0
    %86 = vmatpush1.msra.mxu0 %v48
    %87 = vmatprep.subr.mxu0 0.0
    %88 = vmatpush1.msra.mxu0 %v47
    %89 = vmatprep.subr.mxu0 0.0
    %90 = vmatpush1.msra.mxu0 %v46
    %91 = vmatprep.subr.mxu0 0.0
    %92 = vmatpush1.msra.mxu0 %v45
    %93 = vmatprep.subr.mxu0 0.0
    %94 = vmatpush2.msra.mxu0 0.0
    %95 = vmatprep.subr.mxu0 0.0
    %96 = vmatpush2.msra.mxu0 0.0
    %97 = vmatprep.subr.mxu0 0.0
    %98 = vmatpush2.msra.mxu0 0.0
    %99 = vmatprep.subr.mxu0 0.0
    %100 = vmatpush2.msra.mxu0 0.0
    %101 = vmatprep.subr.mxu0 0.0
    %102 = vmatpush2.msra.mxu0 0.0
    %103 = vmatprep.subr.mxu0 0.0
    %104 = vmatpush2.msra.mxu0 0.0
    %105 = vmatprep.subr.mxu0 0.0
    %106 = vmatpush2.msra.mxu0 0.0
    %107 = vmatprep.subr.mxu0 0.0
    %108 = vmatpush2.msra.mxu0 0.0
    %109 = vmatprep.subr.mxu0 0.0
    %110 = vmatpush2.msra.mxu0 0.0
    %111 = vmatprep.subr.mxu0 0.0
    %112 = vmatpush2.msra.mxu0 0.0
    %113 = vmatprep.subr.mxu0 0.0
    %114 = vmatpush2.msra.mxu0 0.0
    %115 = vmatprep.subr.mxu0 0.0
    %116 = vmatpush2.msra.mxu0 0.0
    %117 = vmatprep.subr.mxu0 0.0
    %118 = vmatpush2.msra.mxu0 0.0
    %119 = vmatprep.subr.mxu0 0.0
    %120 = vmatpush2.msra.mxu0 0.0
    %121 = vmatprep.subr.mxu0 0.0
    %122 = vmatpush2.msra.mxu0 0.0
    %123 = vmatprep.subr.mxu0 0.0
    %124 = vmatpush2.msra.mxu0 0.0
    %125 = vmatprep.mubr.f32.mxu0 0.0
    %126 = vmatmul.mubr.f32.gmra.mxu0 %v44
    %v127 = vpop.f32.mrf.mxu0
    %v128 = vadd.f32 0.0, %v127
    %v129 = vpop.f32.mrf.mxu0
    %130 = vdwg.mxu0
    %v131 = vmul.f32 %v44, %v44
    %132 = vmatprep.subr.mxu0 0.0
    %133 = vmatpush1.msra.mxu0 %v60
    %134 = vmatprep.subr.mxu0 0.0
    %135 = vmatpush1.msra.mxu0 %v59
    %136 = vmatprep.subr.mxu0 0.0
    %137 = vmatpush1.msra.mxu0 %v58
    %138 = vmatprep.subr.mxu0 0.0
    %139 = vmatpush1.msra.mxu0 %v57
    %140 = vmatprep.subr.mxu0 0.0
    %141 = vmatpush1.msra.mxu0 %v56
    %142 = vmatprep.subr.mxu0 0.0
    %143 = vmatpush1.msra.mxu0 %v55
    %144 = vmatprep.subr.mxu0 0.0
    %145 = vmatpush1.msra.mxu0 %v54
    %146 = vmatprep.subr.mxu0 0.0
    %147 = vmatpush1.msra.mxu0 %v53
    %148 = vmatprep.subr.mxu0 0.0
    %149 = vmatpush1.msra.mxu0 %v52
    %150 = vmatprep.subr.mxu0 0.0
    %151 = vmatpush1.msra.mxu0 %v51
    %152 = vmatprep.subr.mxu0 0.0
    %153 = vmatpush1.msra.mxu0 %v50
    %154 = vmatprep.subr.mxu0 0.0
    %155 = vmatpush1.msra.mxu0 %v49
    %156 = vmatprep.subr.mxu0 0.0
    %157 = vmatpush1.msra.mxu0 %v48
    %158 = vmatprep.subr.mxu0 0.0
    %159 = vmatpush1.msra.mxu0 %v47
    %160 = vmatprep.subr.mxu0 0.0
    %161 = vmatpush1.msra.mxu0 %v46
    %162 = vmatprep.subr.mxu0 0.0
    %163 = vmatpush1.msra.mxu0 %v45
    %164 = vmatprep.subr.mxu0 0.0
    %165 = vmatpush2.msra.mxu0 0.0
    %166 = vmatprep.subr.mxu0 0.0
    %167 = vmatpush2.msra.mxu0 0.0
    %168 = vmatprep.subr.mxu0 0.0
    %169 = vmatpush2.msra.mxu0 0.0
    %170 = vmatprep.subr.mxu0 0.0
    %171 = vmatpush2.msra.mxu0 0.0
    %172 = vmatprep.subr.mxu0 0.0
    %173 = vmatpush2.msra.mxu0 0.0
    %174 = vmatprep.subr.mxu0 0.0
    %175 = vmatpush2.msra.mxu0 0.0
    %176 = vmatprep.subr.mxu0 0.0
    %177 = vmatpush2.msra.mxu0 0.0
    %178 = vmatprep.subr.mxu0 0.0
    %179 = vmatpush2.msra.mxu0 0.0
    %180 = vmatprep.subr.mxu0 0.0
    %181 = vmatpush2.msra.mxu0 0.0
    %182 = vmatprep.subr.mxu0 0.0
    %183 = vmatpush2.msra.mxu0 0.0
    %184 = vmatprep.subr.mxu0 0.0
    %185 = vmatpush2.msra.mxu0 0.0
    %186 = vmatprep.subr.mxu0 0.0
    %187 = vmatpush2.msra.mxu0 0.0
    %188 = vmatprep.subr.mxu0 0.0
    %189 = vmatpush2.msra.mxu0 0.0
    %190 = vmatprep.subr.mxu0 0.0
    %191 = vmatpush2.msra.mxu0 0.0
    %192 = vmatprep.subr.mxu0 0.0
    %193 = vmatpush2.msra.mxu0 0.0
    %194 = vmatprep.subr.mxu0 0.0
    %195 = vmatpush2.msra.mxu0 0.0
    %196 = vmatprep.mubr.f32.mxu0 0.0
    %197 = vmatmul.mubr.f32.gmra.mxu0 %v131
    %v198 = vpop.f32.mrf.mxu0
    %v199 = vadd.f32 0.0, %v198
    %v200 = vpop.f32.mrf.mxu0
    %201 = vdwg.mxu0
    %v202 = vmul.f32 %v128, 0.03125
    %v203 = vmul.f32 %v128, %v202
    %v204 = vsub.f32 %v199, %v203
    %v205 = vmax.f32 %v204, 0.0
    %v206 = vrsqrt.pop %v205
    %v207 = vmul.f32 %v205, %v206
    %vm208 = vcmp.eq.f32.partialorder %v205, inf
    %v209 = vsel %vm208, %v205, %v207
    %vm210 = vcmp.eq.f32.partialorder %v205, 0.0
    %v211 = vand.u32 %v205, 2147483648
    %v212 = vsel %vm210, %v211, %v209
    %v213 = vadd.f32 %v212, 1e-06
    %v214 = vrcp.pop %v213
    %v215 = vmul.f32 %v213, %v214
    %v216 = vsub.f32 2.0, %v215
    %v217 = vmul.f32 %v214, %v216
    %v218 = vld [vmem:[%s2] sm:$0x1]
    %v219 = vsub.f32 %v44, %v202
    %v221 = vlaneseq
    %v222 = vshrl.u32 %v221, 7
    %v223 = vsub.s32 0, %v222
    %v224 = vrot.slane %v218, %v223
    %v226 = vmul.f32 %v224, %v219
    %v227 = vmul.f32 %v226, %v217
    %v228 = vld [vmem:[%s3] sm:$0x1]
    %v230 = vlaneseq
    %v231 = vshrl.u32 %v230, 7
    %v232 = vsub.s32 0, %v231
    %v233 = vrot.slane %v228, %v232
    %v235 = vadd.f32 %v227, %v233
    %236 = vst [vmem:[#allocation7] sm:$0xff] %v235
    // Predicated region
    $region26: #{tpu_custom_call.1} parent=1 // pred_check
      _
    $region27: #{tpu_custom_call.1} parent=1 // pred_check_branch
      %238 = sbr.rel (0) target = $region29
    $region28: #{tpu_custom_call.1} parent=1 // pred_region
      %s240 = ssub.s32 128, 128
      %241 = vsyncadd [#allocation4], %s240
      %s243 = sshll.u32 [#allocation7], 4
      %s244 = int_to_ptr.vmem [resolvable:$true] %s243
      %246 = dma.vmem_to_hbm [thread:$0]  %s244, 128, %s4, [#allocation4]
    $region29: #{tpu_custom_call.1} parent=1 // pred_fallthru
      _
    // Predicated region
    $region30: #{tpu_custom_call.1} parent=1 // pred_check
      _
    $region31: #{tpu_custom_call.1} parent=1 // pred_check_branch
      %248 = sbr.rel (0) target = $region33
    $region32: #{tpu_custom_call.1} parent=1 // pred_region
      %249 = dma.done [#allocation4], 128
    $region33: #{tpu_custom_call.1} parent=1 // pred_fallthru
      _
    %250 = vsyncpa [#allocation3], 1
    %251 = vsyncpa [#allocation6], 1
    %252 = vsyncpa [#allocation4], 1

</llo_original>
